<compile_context>
chip_gen: v7x
topology: tpu7x:2x2x1
jax: 0.10.0
libtpu: 0.0.40
codegen_flags: <defaults>
</compile_context>

<pallas_src>
import math
import jax
import jax.numpy as jnp
from jax.experimental import pallas as pl
from jax.experimental.pallas import tpu as pltpu


def _elu(x):
    # ELU, alpha=1.0 (PyTorch default). Clamp the exp argument so the dead
    # branch of jnp.where never produces inf for large positive x.
    return jnp.where(x > 0, x, jnp.exp(jnp.minimum(x, 0.0)) - 1.0)


def _fused_tree_head_kernel(nodes_ref, w1_ref, b1_ref, w2_ref, b2_ref,
                            w3_ref, b3_ref, o_ref):
    # ---- fused aggregator: mean-pool over the node axis -------------------
    inv_n = 1.0 / float(nodes_ref.shape[1])
    x = jnp.sum(nodes_ref[...], axis=1) * inv_n                    # [tb, d] f32

    # ---- layer 1: Linear(d, 2d) + ELU  (bf16 MXU, f32 accumulate) ---------
    h1 = jnp.dot(x.astype(jnp.bfloat16), w1_ref[...],
                 preferred_element_type=jnp.float32) + b1_ref[...]
    h1 = _elu(h1)                                                  # [tb, 2d] f32

    # ---- layer 2: Linear(2d, 2d) + ELU ------------------------------------
    h2 = jnp.dot(h1.astype(jnp.bfloat16), w2_ref[...],
                 preferred_element_type=jnp.float32) + b2_ref[...]
    h2 = _elu(h2)                                                  # [tb, 2d] f32

    # ---- layer 3: Linear(2d, 1) as VPU multiply + lane reduction ----------
    # (avoids an N=1 MXU matmul; b3 is an SMEM scalar)
    y = jnp.sum(h2 * w3_ref[...], axis=-1, keepdims=True) + b3_ref[0, 0]  # [tb, 1]

    # Lane-dense store: broadcast the per-row scalar across all 128 lanes.
    o_ref[...] = jnp.broadcast_to(y, o_ref.shape).astype(o_ref.dtype)


def _pick_tile_b(B):
    # Prefer >=2 grid steps (v7x has 2 TensorCores; batch axis is "parallel")
    # with sublane-aligned tiles, and cap at 256 rows to bound vreg pressure.
    for tb in (256, 128, 64, 32, 16, 8):
        if B % tb == 0 and B // tb >= 2:
            return tb
    return B  # tiny batch: single full-batch tile


def tree_model_head(node_embeds, params, *, tile_b=None):
    """Fused aggregator(mean-pool) + 3-layer MLP head.  node_embeds: [B, n_nodes, d]."""
    B, n_nodes, d = node_embeds.shape
    w1, b1, w2, b2, w3, b3 = params
    assert w1.shape == (d, 2 * d) and w2.shape == (2 * d, 2 * d) and w3.shape == (2 * d, 1)

    if tile_b is None:
        tile_b = _pick_tile_b(B)
    assert B % tile_b == 0

    # bf16 weights for the MXU dots (f32 accumulation inside the kernel).
    w1_bf = w1.astype(jnp.bfloat16)
    w2_bf = w2.astype(jnp.bfloat16)
    # Final layer as a [1, 2d] row for the VPU multiply + lane-reduce path.
    w3_row = w3.reshape(1, 2 * d)
    b3_s = b3.reshape(1, 1)

    grid = (B // tile_b,)
    full2d = lambda i: (0, 0)  # weights/biases: same (whole) block every step

    flops = (B * n_nodes * d                 # fused mean-pool
             + 2 * B * d * (2 * d)           # layer 1
             + 2 * B * (2 * d) * (2 * d)     # layer 2
             + 2 * B * (2 * d))              # layer 3 (mul + reduce)
    transcendentals = 2 * B * (2 * d)        # two ELU layers
    bytes_accessed = (node_embeds.size * 4
                      + w1_bf.size * 2 + w2_bf.size * 2
                      + (b1.size + b2.size + w3_row.size + 1) * 4
                      + B * 128 * 4)

    out_padded = pl.pallas_call(
        _fused_tree_head_kernel,
        out_shape=jax.ShapeDtypeStruct((B, 128), jnp.float32),
        grid_spec=pltpu.PrefetchScalarGridSpec(
            num_scalar_prefetch=0,
            grid=grid,
            in_specs=[
                pl.BlockSpec((tile_b, n_nodes, d), lambda i: (i, 0, 0)),  # node embeds
                pl.BlockSpec((d, 2 * d), full2d),                         # W1 (bf16)
                pl.BlockSpec((1, 2 * d), full2d),                         # b1
                pl.BlockSpec((2 * d, 2 * d), full2d),                     # W2 (bf16)
                pl.BlockSpec((1, 2 * d), full2d),                         # b2
                pl.BlockSpec((1, 2 * d), full2d),                         # W3 row
                pl.BlockSpec(memory_space=pltpu.MemorySpace.SMEM),        # b3 scalar
            ],
            out_specs=pl.BlockSpec((tile_b, 128), lambda i: (i, 0)),
        ),
        compiler_params=pltpu.CompilerParams(
            dimension_semantics=("parallel",)),
        cost_estimate=pl.CostEstimate(
            flops=flops,
            transcendentals=transcendentals,
            bytes_accessed=bytes_accessed),
    )(node_embeds, w1_bf, b1, w2_bf, b2, w3_row, b3_s)

    # Lane-padded output: the per-tree scalar is replicated across lanes.
    return out_padded[:, :1]


def init_params(key, d_model):
    """Deterministic init mimicking PyTorch nn.Linear default (U(-1/sqrt(fan_in), +))."""
    def linear(k, fan_in, fan_out):
        kw, kb = jax.random.split(k)
        bound = 1.0 / math.sqrt(fan_in)
        w = jax.random.uniform(kw, (fan_in, fan_out), jnp.float32, -bound, bound)
        b = jax.random.uniform(kb, (1, fan_out), jnp.float32, -bound, bound)
        return w, b

    k1, k2, k3 = jax.random.split(key, 3)
    w1, b1 = linear(k1, d_model, 2 * d_model)
    w2, b2 = linear(k2, 2 * d_model, 2 * d_model)
    w3, b3 = linear(k3, 2 * d_model, 1)
    return (w1, b1, w2, b2, w3, b3)


def tree_model_forward(batch_node_embeds, params):
    """Mirrors TreeModel.forward: empty batch -> empty tensor, else MLP(aggregator(...))."""
    # TODO(synk): the real `aggregator` is an external learned tree-aggregation module
    # (called with ignore_data=True, ebm_cache=True); modeled as a mean-pool over the
    # node axis, fused directly into the Pallas kernel.
    if batch_node_embeds.shape[0] == 0:
        return jnp.array([], dtype=jnp.float32)
    return tree_model_head(batch_node_embeds, params)


def _reference(batch_node_embeds, params):
    w1, b1, w2, b2, w3, b3 = params
    x = jnp.mean(batch_node_embeds, axis=1)
    h1 = _elu(x @ w1 + b1)
    h2 = _elu(h1 @ w2 + b2)
    return h2 @ w3 + b3


if __name__ == "__main__":
    key = jax.random.PRNGKey(0)
    k_in, k_par = jax.random.split(key)

    B, n_nodes, d_model = 16, 8, 32          # batch of trees, nodes per tree, embed dim
    batch_node_embeds = jax.random.normal(k_in, (B, n_nodes, d_model), jnp.float32)
    params = init_params(k_par, d_model)

    out = tree_model_forward(batch_node_embeds, params)
    out = jax.block_until_ready(out)

    ref = _reference(batch_node_embeds, params)
    assert out.shape == (B, 1)
    # bf16 MXU inputs -> relaxed tolerance vs. the f32 reference.
    assert jnp.allclose(out, ref, atol=3e-2, rtol=3e-2), "mismatch vs reference"

    print("KERNEL_OK")
</pallas_src>

<mosaic_0001>
module attributes {stable_mosaic.version = 11 : i64} {
  func.func @_fused_tree_head_kernel(%arg0: i32, %arg1: memref<8x8x32xf32, #tpu.memory_space<vmem>>, %arg2: memref<32x64xbf16, #tpu.memory_space<vmem>>, %arg3: memref<1x64xf32, #tpu.memory_space<vmem>>, %arg4: memref<64x64xbf16, #tpu.memory_space<vmem>>, %arg5: memref<1x64xf32, #tpu.memory_space<vmem>>, %arg6: memref<1x64xf32, #tpu.memory_space<vmem>>, %arg7: memref<1x1xf32, #tpu.memory_space<smem>>, %arg8: memref<8x128xf32, #tpu.memory_space<vmem>>) attributes {dimension_semantics = [#tpu.dimension_semantics<parallel>], iteration_bounds = array<i64: 2>, scalar_prefetch = 0 : i64, scratch_operands = 0 : i64, tpu.core_type = #tpu.core_type<tc>, window_params = [{transform_indices = @transform_0, window_bounds = array<i64: 8, 8, 32>}, {pipeline_mode = #tpu.pipeline_mode<synchronous>, transform_indices = @transform_1, window_bounds = array<i64: 32, 64>}, {pipeline_mode = #tpu.pipeline_mode<synchronous>, transform_indices = @transform_2, window_bounds = array<i64: 1, 64>}, {pipeline_mode = #tpu.pipeline_mode<synchronous>, transform_indices = @transform_3, window_bounds = array<i64: 64, 64>}, {pipeline_mode = #tpu.pipeline_mode<synchronous>, transform_indices = @transform_4, window_bounds = array<i64: 1, 64>}, {pipeline_mode = #tpu.pipeline_mode<synchronous>, transform_indices = @transform_5, window_bounds = array<i64: 1, 64>}, {transform_indices = @transform_6, window_bounds = array<i64: 1, 1>}, {transform_indices = @transform_7, window_bounds = array<i64: 8, 128>}]} {
    %c0 = arith.constant 0 : index
    %c0_0 = arith.constant 0 : index
    %c0_1 = arith.constant 0 : index
    %0 = vector.load %arg1[%c0, %c0_0, %c0_1] : memref<8x8x32xf32, #tpu.memory_space<vmem>>, vector<8x8x32xf32>
    %cst = arith.constant dense<0.000000e+00> : vector<8x32xf32>
    %1 = vector.multi_reduction <add>, %0, %cst [1] : vector<8x8x32xf32> to vector<8x32xf32>
    %cst_2 = arith.constant 1.250000e-01 : f32
    %2 = vector.broadcast %cst_2 : f32 to vector<8x32xf32>
    %3 = arith.mulf %1, %2 : vector<8x32xf32>
    %4 = arith.truncf %3 : vector<8x32xf32> to vector<8x32xbf16>
    %c0_3 = arith.constant 0 : index
    %c0_4 = arith.constant 0 : index
    %5 = vector.load %arg2[%c0_3, %c0_4] : memref<32x64xbf16, #tpu.memory_space<vmem>>, vector<32x64xbf16>
    %cst_5 = arith.constant dense<0.000000e+00> : vector<8x64xf32>
    %6 = tpu.matmul %4, %5, %cst_5 {dimension_numbers = #tpu.dot_dimension_numbers<[1], [0], [0], [1], [0, 0, 1, 1], [], []>} : vector<8x32xbf16>, vector<32x64xbf16>, vector<8x64xf32> -> vector<8x64xf32>
    %c0_6 = arith.constant 0 : index
    %c0_7 = arith.constant 0 : index
    %7 = vector.load %arg3[%c0_6, %c0_7] : memref<1x64xf32, #tpu.memory_space<vmem>>, vector<1x64xf32>
    %8 = vector.broadcast %7 : vector<1x64xf32> to vector<8x64xf32>
    %9 = arith.addf %6, %8 : vector<8x64xf32>
    %cst_8 = arith.constant 0.000000e+00 : f32
    %10 = vector.broadcast %cst_8 : f32 to vector<8x64xf32>
    %11 = arith.cmpf ogt, %9, %10 : vector<8x64xf32>
    %cst_9 = arith.constant 0.000000e+00 : f32
    %12 = vector.broadcast %cst_9 : f32 to vector<8x64xf32>
    %13 = arith.minimumf %9, %12 : vector<8x64xf32>
    %14 = math.exp %13 : vector<8x64xf32>
    %cst_10 = arith.constant 1.000000e+00 : f32
    %15 = vector.broadcast %cst_10 : f32 to vector<8x64xf32>
    %16 = arith.subf %14, %15 : vector<8x64xf32>
    %17 = arith.select %11, %9, %16 : vector<8x64xi1>, vector<8x64xf32>
    %18 = arith.truncf %17 : vector<8x64xf32> to vector<8x64xbf16>
    %c0_11 = arith.constant 0 : index
    %c0_12 = arith.constant 0 : index
    %19 = vector.load %arg4[%c0_11, %c0_12] : memref<64x64xbf16, #tpu.memory_space<vmem>>, vector<64x64xbf16>
    %cst_13 = arith.constant dense<0.000000e+00> : vector<8x64xf32>
    %20 = tpu.matmul %18, %19, %cst_13 {dimension_numbers = #tpu.dot_dimension_numbers<[1], [0], [0], [1], [0, 0, 1, 1], [], []>} : vector<8x64xbf16>, vector<64x64xbf16>, vector<8x64xf32> -> vector<8x64xf32>
    %c0_14 = arith.constant 0 : index
    %c0_15 = arith.constant 0 : index
    %21 = vector.load %arg5[%c0_14, %c0_15] : memref<1x64xf32, #tpu.memory_space<vmem>>, vector<1x64xf32>
    %22 = vector.broadcast %21 : vector<1x64xf32> to vector<8x64xf32>
    %23 = arith.addf %20, %22 : vector<8x64xf32>
    %cst_16 = arith.constant 0.000000e+00 : f32
    %24 = vector.broadcast %cst_16 : f32 to vector<8x64xf32>
    %25 = arith.cmpf ogt, %23, %24 : vector<8x64xf32>
    %cst_17 = arith.constant 0.000000e+00 : f32
    %26 = vector.broadcast %cst_17 : f32 to vector<8x64xf32>
    %27 = arith.minimumf %23, %26 : vector<8x64xf32>
    %28 = math.exp %27 : vector<8x64xf32>
    %cst_18 = arith.constant 1.000000e+00 : f32
    %29 = vector.broadcast %cst_18 : f32 to vector<8x64xf32>
    %30 = arith.subf %28, %29 : vector<8x64xf32>
    %31 = arith.select %25, %23, %30 : vector<8x64xi1>, vector<8x64xf32>
    %c0_19 = arith.constant 0 : index
    %c0_20 = arith.constant 0 : index
    %32 = vector.load %arg6[%c0_19, %c0_20] : memref<1x64xf32, #tpu.memory_space<vmem>>, vector<1x64xf32>
    %33 = vector.broadcast %32 : vector<1x64xf32> to vector<8x64xf32>
    %34 = arith.mulf %31, %33 : vector<8x64xf32>
    %cst_21 = arith.constant dense<0.000000e+00> : vector<8xf32>
    %35 = vector.multi_reduction <add>, %34, %cst_21 [1] : vector<8x64xf32> to vector<8xf32>
    %36 = vector.shape_cast %35 : vector<8xf32> to vector<8x1xf32>
    %c0_22 = arith.constant 0 : index
    %c0_23 = arith.constant 0 : index
    %37 = memref.load %arg7[%c0_22, %c0_23] : memref<1x1xf32, #tpu.memory_space<smem>>
    %38 = vector.broadcast %37 : f32 to vector<8x1xf32>
    %39 = arith.addf %36, %38 : vector<8x1xf32>
    %40 = vector.shape_cast %39 : vector<8x1xf32> to vector<8x1xf32>
    %41 = vector.broadcast %40 : vector<8x1xf32> to vector<8x128xf32>
    %c0_24 = arith.constant 0 : index
    %c0_25 = arith.constant 0 : index
    %42 = vector.load %arg8[%c0_24, %c0_25] : memref<8x128xf32, #tpu.memory_space<vmem>>, vector<8x128xf32>
    tpu.vector_store %arg8[%c0_24, %c0_25], %41 {strides = array<i32>} : memref<8x128xf32, #tpu.memory_space<vmem>>, vector<8x128xf32>,
    return
  }
  func.func @transform_0(%arg0: i32) -> (i32, i32, i32) {
    %c0_i32 = arith.constant 0 : i32
    %c0_i32_0 = arith.constant 0 : i32
    %c0_i32_1 = arith.constant 0 : i32
    return %arg0, %c0_i32, %c0_i32_0 : i32, i32, i32
  }
  func.func @transform_1(%arg0: i32) -> (i32, i32) {
    %c0_i32 = arith.constant 0 : i32
    %c0_i32_0 = arith.constant 0 : i32
    %c0_i32_1 = arith.constant 0 : i32
    return %c0_i32, %c0_i32_0 : i32, i32
  }
  func.func @transform_2(%arg0: i32) -> (i32, i32) {
    %c0_i32 = arith.constant 0 : i32
    %c0_i32_0 = arith.constant 0 : i32
    %c0_i32_1 = arith.constant 0 : i32
    return %c0_i32, %c0_i32_0 : i32, i32
  }
  func.func @transform_3(%arg0: i32) -> (i32, i32) {
    %c0_i32 = arith.constant 0 : i32
    %c0_i32_0 = arith.constant 0 : i32
    %c0_i32_1 = arith.constant 0 : i32
    return %c0_i32, %c0_i32_0 : i32, i32
  }
  func.func @transform_4(%arg0: i32) -> (i32, i32) {
    %c0_i32 = arith.constant 0 : i32
    %c0_i32_0 = arith.constant 0 : i32
    %c0_i32_1 = arith.constant 0 : i32
    return %c0_i32, %c0_i32_0 : i32, i32
  }
  func.func @transform_5(%arg0: i32) -> (i32, i32) {
    %c0_i32 = arith.constant 0 : i32
    %c0_i32_0 = arith.constant 0 : i32
    %c0_i32_1 = arith.constant 0 : i32
    return %c0_i32, %c0_i32_0 : i32, i32
  }
  func.func @transform_6(%arg0: i32) -> (i32, i32) {
    %c0_i32 = arith.constant 0 : i32
    %c0_i32_0 = arith.constant 0 : i32
    %c0_i32_1 = arith.constant 0 : i32
    return %c0_i32, %c0_i32_0 : i32, i32
  }
  func.func @transform_7(%arg0: i32) -> (i32, i32) {
    %c0_i32 = arith.constant 0 : i32
    %c0_i32_0 = arith.constant 0 : i32
    return %arg0, %c0_i32 : i32, i32
  }
}

</mosaic_0001>

<llo_original>
// kernel: tpu_custom_call.1
$region0: #{tpu_custom_call.1}
  #allocation0 [shape = 'u32[]', space=smem, size = 0x4, offset = 0x4, fixed_abs, tag = 'smem constant byte address 0x4 - core index']
  #allocation1 [shape = 'u32[144,128]{1,0:T(1,128)}', space=vmem, size = 0x12000, scoped, tag = 'internal scratch']
  #allocation2 [shape = 'f32[1,1]{1,0:T(1,128)S(6)}', space=smem, size = 0x200, scoped, tag = 'scoped memory for tpu_custom_call.1']
  %s0 = inlined_call_operand.hbm [shape: f32[16,8,32], index: 0, kind: input, shape index: {}]
  %s1 = inlined_call_operand.hbm [shape: bf16[32,64], index: 1, kind: input, shape index: {}]
  %s2 = inlined_call_operand.vmem [shape: f32[1,64], index: 2, kind: input, shape index: {}]
  %s3 = inlined_call_operand.hbm [shape: bf16[64,64], index: 3, kind: input, shape index: {}]
  %s4 = inlined_call_operand.vmem [shape: f32[1,64], index: 4, kind: input, shape index: {}]
  %s5 = inlined_call_operand.vmem [shape: f32[1,64], index: 5, kind: input, shape index: {}]
  %s6 = inlined_call_operand.<no memory space> [shape: f32[1,1], index: 6, kind: input, shape index: {}]
  %s7 = inlined_call_operand.hbm [shape: f32[16,128], index: 7, kind: output, shape index: {}]
  %s8 = sld [smem:[#allocation0]]
  $region73: #{tpu_custom_call.1} parent=0
    _
  %s10 = ssub.s32 1, %s8
  %s11 = scalar_select 0, %s10, %s8
  %12 = sst [smem:[#allocation2]] %s6
  $region1: #{tpu_custom_call.1} parent=0
    #allocation3 [shape = 'u8[65536]{0}', space=vmem, size = 0x10000, scoped, tag = 'input window, operand 0']
    #allocation4 [shape = 's32[2]{0}', space=sflag, size = 0x8, scoped, tag = 'scoped memory for tpu_custom_call.1']
    #allocation5 [shape = 's32[2]{0}', space=sflag, size = 0x8, scoped, tag = 'scoped memory for tpu_custom_call.1']
    #allocation6 [shape = 'u8[8192]{0}', space=vmem, size = 0x2000, scoped, tag = 'input window, operand 1, single buffered']
    #allocation7 [shape = 's32[1]{0}', space=sflag, size = 0x4, scoped, tag = 'scoped memory for tpu_custom_call.1']
    #allocation8 [shape = 'u8[16384]{0}', space=vmem, size = 0x4000, scoped, tag = 'input window, operand 3, single buffered']
    #allocation9 [shape = 'u8[8192]{0}', space=vmem, size = 0x2000, scoped, tag = 'output window, operand 0']
    %13 = vsyncpa [#allocation4], 0
    %s14 = scalar_lea.sflag [#allocation4], 1
    %15 = vsyncpa %s14, 0
    %16 = vsyncpa [#allocation7], 0
    %17 = vsyncpa [#allocation5], 0
    %s18 = scalar_lea.sflag [#allocation5], 1
    %19 = vsyncpa %s18, 0
    loop: start=0, step=1, limit=4
    $region2: #{tpu_custom_call.1} parent=1 // loop_pre_header
      _
    $region3: #{tpu_custom_call.1} parent=1 // loop_header
      %s21 = sphi 0, %s25
      %p22 = scmp.ge.s32.totalorder %s21, 4
      %s31 = sphi 0, %s33
      %s34 = sphi 0, %s31
      %s35 = sphi 0, %s34
      %s51 = sphi 0, %s35
      %s55 = sphi 0, %s55
      %s57 = sphi 0, %s55
      %s58 = sphi 0, %s57
      %s72 = sphi 0, %s58
      %s76 = sphi 0, %s76
      %s78 = sphi 0, %s76
      %s79 = sphi 0, %s78
      %s93 = sphi 0, %s79
      %s97 = sphi 0, %s97
      %s99 = sphi 0, %s97
      %s100 = sphi 0, %s99
      %s114 = sphi 0, %s100
      %s118 = sphi 0, %s118
      %s120 = sphi 0, %s118
      %s121 = sphi 0, %s120
      %s135 = sphi 0, %s121
      %s139 = sphi 0, %s139
      %s141 = sphi 0, %s139
      %s142 = sphi 0, %s141
      %s156 = sphi 0, %s142
      %s160 = sphi 0, %s160
      %s162 = sphi 0, %s160
      %s163 = sphi 0, %s162
      %s177 = sphi 0, %s163
      %s183 = sphi 0, %s185
      %s186 = sphi 0, %s183
      %s187 = sphi 0, %s186
      %s203 = sphi 0, %s187
    $region4: #{tpu_custom_call.1} parent=1 // loop_header_branch
      %24 = sbr.rel (%p22) target = $region8
    $region5: #{tpu_custom_call.1} parent=1 // loop_body
      %s26 = ssub.s32 %s21, 1
      %s27 = ssub.s32 %s21, 2
      %s28 = sadd.s32 %s21, 1
      %s29 = ssub.s32 %s21, %s28
      %p30 = scmp.eq.s32.totalorder %s29, 0
      %s32 = sadd.s32 %s31, 1
      %s33 = scalar_select %p30, %s31, %s32
      %p36 = pneg %p30
      %p37 = scmp.eq.s32.totalorder %s21, 1
      %p38 = por %p36, %p37
      %p39 = scmp.ne.s32.totalorder %s31, %s34
      %p40 = scmp.eq.s32.totalorder %s21, 0
      %p41 = por %p39, %p40
      %p42 = scmp.ne.s32.totalorder %s31, %s34
      %p43 = scmp.eq.s32.totalorder %s26, 1
      %p44 = por %p42, %p43
      %p45 = scmp.ne.s32.totalorder %s34, %s35
      %p46 = scmp.eq.s32.totalorder %s26, 0
      %p47 = por %p45, %p46
      %p48 = scmp.ne.s32.totalorder %s34, %s35
      %p49 = scmp.eq.s32.totalorder %s27, 1
      %p50 = por %p48, %p49
      %p52 = scmp.ne.s32.totalorder %s35, %s51
      %p53 = scmp.eq.s32.totalorder %s27, 0
      %p54 = por %p52, %p53
      %s56 = sadd.s32 %s55, 1
      %p59 = scmp.eq.s32.totalorder %s21, 1
      %p60 = scmp.ne.s32.totalorder %s55, %s57
      %p61 = scmp.eq.s32.totalorder %s21, 0
      %p62 = por %p60, %p61
      %p63 = scmp.ne.s32.totalorder %s55, %s57
      %p64 = scmp.eq.s32.totalorder %s26, 1
      %p65 = por %p63, %p64
      %p66 = scmp.ne.s32.totalorder %s57, %s58
      %p67 = scmp.eq.s32.totalorder %s26, 0
      %p68 = por %p66, %p67
      %p69 = scmp.ne.s32.totalorder %s57, %s58
      %p70 = scmp.eq.s32.totalorder %s27, 1
      %p71 = por %p69, %p70
      %p73 = scmp.ne.s32.totalorder %s58, %s72
      %p74 = scmp.eq.s32.totalorder %s27, 0
      %p75 = por %p73, %p74
      %s77 = sadd.s32 %s76, 1
      %p80 = scmp.eq.s32.totalorder %s21, 1
      %p81 = scmp.ne.s32.totalorder %s76, %s78
      %p82 = scmp.eq.s32.totalorder %s21, 0
      %p83 = por %p81, %p82
      %p84 = scmp.ne.s32.totalorder %s76, %s78
      %p85 = scmp.eq.s32.totalorder %s26, 1
      %p86 = por %p84, %p85
      %p87 = scmp.ne.s32.totalorder %s78, %s79
      %p88 = scmp.eq.s32.totalorder %s26, 0
      %p89 = por %p87, %p88
      %p90 = scmp.ne.s32.totalorder %s78, %s79
      %p91 = scmp.eq.s32.totalorder %s27, 1
      %p92 = por %p90, %p91
      %p94 = scmp.ne.s32.totalorder %s79, %s93
      %p95 = scmp.eq.s32.totalorder %s27, 0
      %p96 = por %p94, %p95
      %s98 = sadd.s32 %s97, 1
      %p101 = scmp.eq.s32.totalorder %s21, 1
      %p102 = scmp.ne.s32.totalorder %s97, %s99
      %p103 = scmp.eq.s32.totalorder %s21, 0
      %p104 = por %p102, %p103
      %p105 = scmp.ne.s32.totalorder %s97, %s99
      %p106 = scmp.eq.s32.totalorder %s26, 1
      %p107 = por %p105, %p106
      %p108 = scmp.ne.s32.totalorder %s99, %s100
      %p109 = scmp.eq.s32.totalorder %s26, 0
      %p110 = por %p108, %p109
      %p111 = scmp.ne.s32.totalorder %s99, %s100
      %p112 = scmp.eq.s32.totalorder %s27, 1
      %p113 = por %p111, %p112
      %p115 = scmp.ne.s32.totalorder %s100, %s114
      %p116 = scmp.eq.s32.totalorder %s27, 0
      %p117 = por %p115, %p116
      %s119 = sadd.s32 %s118, 1
      %p122 = scmp.eq.s32.totalorder %s21, 1
      %p123 = scmp.ne.s32.totalorder %s118, %s120
      %p124 = scmp.eq.s32.totalorder %s21, 0
      %p125 = por %p123, %p124
      %p126 = scmp.ne.s32.totalorder %s118, %s120
      %p127 = scmp.eq.s32.totalorder %s26, 1
      %p128 = por %p126, %p127
      %p129 = scmp.ne.s32.totalorder %s120, %s121
      %p130 = scmp.eq.s32.totalorder %s26, 0
      %p131 = por %p129, %p130
      %p132 = scmp.ne.s32.totalorder %s120, %s121
      %p133 = scmp.eq.s32.totalorder %s27, 1
      %p134 = por %p132, %p133
      %p136 = scmp.ne.s32.totalorder %s121, %s135
      %p137 = scmp.eq.s32.totalorder %s27, 0
      %p138 = por %p136, %p137
      %s140 = sadd.s32 %s139, 1
      %p143 = scmp.eq.s32.totalorder %s21, 1
      %p144 = scmp.ne.s32.totalorder %s139, %s141
      %p145 = scmp.eq.s32.totalorder %s21, 0
      %p146 = por %p144, %p145
      %p147 = scmp.ne.s32.totalorder %s139, %s141
      %p148 = scmp.eq.s32.totalorder %s26, 1
      %p149 = por %p147, %p148
      %p150 = scmp.ne.s32.totalorder %s141, %s142
      %p151 = scmp.eq.s32.totalorder %s26, 0
      %p152 = por %p150, %p151
      %p153 = scmp.ne.s32.totalorder %s141, %s142
      %p154 = scmp.eq.s32.totalorder %s27, 1
      %p155 = por %p153, %p154
      %p157 = scmp.ne.s32.totalorder %s142, %s156
      %p158 = scmp.eq.s32.totalorder %s27, 0
      %p159 = por %p157, %p158
      %s161 = sadd.s32 %s160, 1
      %p164 = scmp.eq.s32.totalorder %s21, 1
      %p165 = scmp.ne.s32.totalorder %s160, %s162
      %p166 = scmp.eq.s32.totalorder %s21, 0
      %p167 = por %p165, %p166
      %p168 = scmp.ne.s32.totalorder %s160, %s162
      %p169 = scmp.eq.s32.totalorder %s26, 1
      %p170 = por %p168, %p169
      %p171 = scmp.ne.s32.totalorder %s162, %s163
      %p172 = scmp.eq.s32.totalorder %s26, 0
      %p173 = por %p171, %p172
      %p174 = scmp.ne.s32.totalorder %s162, %s163
      %p175 = scmp.eq.s32.totalorder %s27, 1
      %p176 = por %p174, %p175
      %p178 = scmp.ne.s32.totalorder %s163, %s177
      %p179 = scmp.eq.s32.totalorder %s27, 0
      %p180 = por %p178, %p179
      %s181 = ssub.s32 %s21, %s28
      %p182 = scmp.eq.s32.totalorder %s181, 0
      %s184 = sadd.s32 %s183, 1
      %s185 = scalar_select %p182, %s183, %s184
      %p188 = pneg %p182
      %p189 = scmp.eq.s32.totalorder %s21, 1
      %p190 = por %p188, %p189
      %p191 = scmp.ne.s32.totalorder %s183, %s186
      %p192 = scmp.eq.s32.totalorder %s21, 0
      %p193 = por %p191, %p192
      %p194 = scmp.ne.s32.totalorder %s183, %s186
      %p195 = scmp.eq.s32.totalorder %s26, 1
      %p196 = por %p194, %p195
      %p197 = scmp.ne.s32.totalorder %s186, %s187
      %p198 = scmp.eq.s32.totalorder %s26, 0
      %p199 = por %p197, %p198
      %p200 = scmp.ne.s32.totalorder %s186, %s187
      %p201 = scmp.eq.s32.totalorder %s27, 1
      %p202 = por %p200, %p201
      %p204 = scmp.ne.s32.totalorder %s187, %s203
      %p205 = scmp.eq.s32.totalorder %s27, 0
      %p206 = por %p204, %p205
      %p207 = scmp.le.s32.totalorder 1, %s21
      %p208 = scmp.lt.s32.totalorder %s21, 3
      %p209 = pnand %p207, %p208
      %p210 = pneg %p209
      // Predicated region
      $region9: #{tpu_custom_call.1} parent=5 // pred_check
        _
      $region10: #{tpu_custom_call.1} parent=5 // pred_check_branch
        %212 = sbr.rel (%p209) target = $region12
      $region11: #{tpu_custom_call.1} parent=5 // pred_region
        %s213 = ssub.s32 %s21, 1
        // Predicated region
        $region13: #{tpu_custom_call.1} parent=11 // pred_check
          %p214 = pneg %p68
        $region14: #{tpu_custom_call.1} parent=11 // pred_check_branch
          %216 = sbr.rel (%p214) target = $region16
        $region15: #{tpu_custom_call.1} parent=11 // pred_region
          %s218 = ssub.s32 256, 256
          %219 = vsyncadd [#allocation7], %s218
          %s220 = sshll.u32 [#allocation6], 4
          %s221 = int_to_ptr.vmem [resolvable:$true] %s220
          %226 = dma.hbm_to_vmem [thread:$0]  %s1, 256, %s221, [#allocation7], 64, 64, 4
        $region16: #{tpu_custom_call.1} parent=11 // pred_fallthru
          _
        // Predicated region
        $region17: #{tpu_custom_call.1} parent=11 // pred_check
          %p227 = pneg %p89
        $region18: #{tpu_custom_call.1} parent=11 // pred_check_branch
          %229 = sbr.rel (%p227) target = $region20
        $region19: #{tpu_custom_call.1} parent=11 // pred_region
          _
        $region20: #{tpu_custom_call.1} parent=11 // pred_fallthru
          _
        // Predicated region
        $region21: #{tpu_custom_call.1} parent=11 // pred_check
          %p230 = pneg %p110
        $region22: #{tpu_custom_call.1} parent=11 // pred_check_branch
          %232 = sbr.rel (%p230) target = $region24
        $region23: #{tpu_custom_call.1} parent=11 // pred_region
          %s234 = ssub.s32 512, 512
          %235 = vsyncadd [#allocation7], %s234
          %s236 = sshll.u32 [#allocation8], 4
          %s237 = int_to_ptr.vmem [resolvable:$true] %s236
          %242 = dma.hbm_to_vmem [thread:$0]  %s3, 512, %s237, [#allocation7], 64, 64, 4
        $region24: #{tpu_custom_call.1} parent=11 // pred_fallthru
          _
        // Predicated region
        $region25: #{tpu_custom_call.1} parent=11 // pred_check
          %p243 = pneg %p131
        $region26: #{tpu_custom_call.1} parent=11 // pred_check_branch
          %245 = sbr.rel (%p243) target = $region28
        $region27: #{tpu_custom_call.1} parent=11 // pred_region
          _
        $region28: #{tpu_custom_call.1} parent=11 // pred_fallthru
          _
        // Predicated region
        $region29: #{tpu_custom_call.1} parent=11 // pred_check
          %p246 = pneg %p152
        $region30: #{tpu_custom_call.1} parent=11 // pred_check_branch
          %248 = sbr.rel (%p246) target = $region32
        $region31: #{tpu_custom_call.1} parent=11 // pred_region
          _
        $region32: #{tpu_custom_call.1} parent=11 // pred_fallthru
          _
        // Predicated region
        $region33: #{tpu_custom_call.1} parent=11 // pred_check
          %p249 = pneg %p173
        $region34: #{tpu_custom_call.1} parent=11 // pred_check_branch
          %251 = sbr.rel (%p249) target = $region36
        $region35: #{tpu_custom_call.1} parent=11 // pred_region
          _
        $region36: #{tpu_custom_call.1} parent=11 // pred_fallthru
          _
      $region12: #{tpu_custom_call.1} parent=5 // pred_fallthru
        _
      %p252 = scmp.lt.s32.totalorder %s21, 2
      // Predicated region
      $region37: #{tpu_custom_call.1} parent=5 // pred_check
        %p253 = pneg %p252
      $region38: #{tpu_custom_call.1} parent=5 // pred_check_branch
        %255 = sbr.rel (%p253) target = $region40
      $region39: #{tpu_custom_call.1} parent=5 // pred_region
        // Predicated region
        $region41: #{tpu_custom_call.1} parent=39 // pred_check
          %p256 = pneg %p41
        $region42: #{tpu_custom_call.1} parent=39 // pred_check_branch
          %258 = sbr.rel (%p256) target = $region44
        $region43: #{tpu_custom_call.1} parent=39 // pred_region
          %s259 = sand.u32 %s31, 1
          %s260 = scalar_lea.sflag [#allocation4], %s259
          %s261 = sand.u32 %s31, 1
          %s262 = smul.addr %s261, 64
          %s263 = scalar_lea.vmem [#allocation3], %s262
          %s264 = smul.u32 8, %s21
          %s266 = ssub.s32 1024, 1024
          %267 = vsyncadd %s260, %s266
          %s268 = smul.addr %s264, 128
          %s269 = scalar_lea.hbm %s0, %s268
          %s270 = sshll.u32 %s263, 4
          %s271 = int_to_ptr.vmem [resolvable:$true] %s270
          %276 = dma.hbm_to_vmem [thread:$0]  %s269, 1024, %s271, %s260, 128, 128, 8
        $region44: #{tpu_custom_call.1} parent=39 // pred_fallthru
          _
      $region40: #{tpu_custom_call.1} parent=5 // pred_fallthru
        _
      %p277 = scmp.le.s32.totalorder 1, %s21
      %p278 = scmp.lt.s32.totalorder %s21, 3
      %p279 = pnand %p277, %p278
      %p280 = pneg %p279
      // Predicated region
      $region45: #{tpu_custom_call.1} parent=5 // pred_check
        _
      $region46: #{tpu_custom_call.1} parent=5 // pred_check_branch
        %282 = sbr.rel (%p279) target = $region48
      $region47: #{tpu_custom_call.1} parent=5 // pred_region
        %s283 = ssub.s32 %s21, 1
        %s284 = sand.u32 %s34, 1
        %s285 = scalar_lea.sflag [#allocation4], %s284
        %s286 = sand.u32 %s34, 1
        %s287 = smul.addr %s286, 64
        %s288 = scalar_lea.vmem [#allocation3], %s287
        // Predicated region
        $region49: #{tpu_custom_call.1} parent=47 // pred_check
          %p289 = pneg %p47
        $region50: #{tpu_custom_call.1} parent=47 // pred_check_branch
          %291 = sbr.rel (%p289) target = $region52
        $region51: #{tpu_custom_call.1} parent=47 // pred_region
          %292 = dma.done %s285, 1024
        $region52: #{tpu_custom_call.1} parent=47 // pred_fallthru
          _
        // Predicated region
        $region53: #{tpu_custom_call.1} parent=47 // pred_check
          %p293 = pneg %p68
        $region54: #{tpu_custom_call.1} parent=47 // pred_check_branch
          %295 = sbr.rel (%p293) target = $region56
        $region55: #{tpu_custom_call.1} parent=47 // pred_region
          %296 = dma.done [#allocation7], 256
        $region56: #{tpu_custom_call.1} parent=47 // pred_fallthru
          _
        // Predicated region
        $region57: #{tpu_custom_call.1} parent=47 // pred_check
          %p297 = pneg %p110
        $region58: #{tpu_custom_call.1} parent=47 // pred_check_branch
          %299 = sbr.rel (%p297) target = $region60
        $region59: #{tpu_custom_call.1} parent=47 // pred_region
          %300 = dma.done [#allocation7], 512
        $region60: #{tpu_custom_call.1} parent=47 // pred_fallthru
          _
        %s301 = sand.u32 %s34, 1
        %s302 = scalar_lea.sflag [#allocation4], %s301
        %s303 = sand.u32 %s34, 1
        %s304 = smul.addr %s303, 64
        %s305 = scalar_lea.vmem [#allocation3], %s304
        %p306 = pneg %p47
        %p307 = pneg %p44
        %p308 = pneg %p68
        %p309 = pneg %p65
        %p310 = pneg %p89
        %p311 = pneg %p86
        %p312 = pneg %p110
        %p313 = pneg %p107
        %p314 = pneg %p131
        %p315 = pneg %p128
        %p316 = pneg %p152
        %p317 = pneg %p149
        %p318 = pneg %p173
        %p319 = pneg %p170
        %p320 = pneg %p199
        %p321 = pneg %p196
        %s322 = sand.u32 %s186, 1
        %s323 = scalar_lea.sflag [#allocation5], %s322
        %s324 = sand.u32 %s186, 1
        %s325 = smul.addr %s324, 8
        %s326 = scalar_lea.vmem [#allocation9], %s325
        %s327 = smul.u32 8, %s26
        %v329 = vld [vmem:[%s288] sm:$0xff]
        %v330 = vld [vmem:[%s288 + $0x8] sm:$0xff]
        %v331 = vld [vmem:[%s288 + $0x10] sm:$0xff]
        %v332 = vld [vmem:[%s288 + $0x18] sm:$0xff]
        %v333 = vld [vmem:[%s288 + $0x20] sm:$0xff]
        %v334 = vld [vmem:[%s288 + $0x28] sm:$0xff]
        %v335 = vld [vmem:[%s288 + $0x30] sm:$0xff]
        %v336 = vld [vmem:[%s288 + $0x38] sm:$0xff]
        %vm337 = vcmask 261120
        %v338 = vsel %vm337, %v329, 0.0
        %v339 = vrot.slane %v338, 4
        %v340 = vadd.f32 %v338, %v339
        %v341 = vrot.slane %v340, 2
        %v342 = vadd.f32 %v340, %v341
        %v343 = vrot.slane %v342, 1
        %v344 = vadd.f32 %v342, %v343
        %v345 = vsel %vm337, %v330, 0.0
        %v346 = vrot.slane %v345, 4
        %v347 = vadd.f32 %v345, %v346
        %v348 = vrot.slane %v347, 2
        %v349 = vadd.f32 %v347, %v348
        %v350 = vrot.slane %v349, 1
        %v351 = vadd.f32 %v349, %v350
        %v352 = vsel %vm337, %v331, 0.0
        %v353 = vrot.slane %v352, 4
        %v354 = vadd.f32 %v352, %v353
        %v355 = vrot.slane %v354, 2
        %v356 = vadd.f32 %v354, %v355
        %v357 = vrot.slane %v356, 1
        %v358 = vadd.f32 %v356, %v357
        %v359 = vsel %vm337, %v332, 0.0
        %v360 = vrot.slane %v359, 4
        %v361 = vadd.f32 %v359, %v360
        %v362 = vrot.slane %v361, 2
        %v363 = vadd.f32 %v361, %v362
        %v364 = vrot.slane %v363, 1
        %v365 = vadd.f32 %v363, %v364
        %v366 = vsel %vm337, %v333, 0.0
        %v367 = vrot.slane %v366, 4
        %v368 = vadd.f32 %v366, %v367
        %v369 = vrot.slane %v368, 2
        %v370 = vadd.f32 %v368, %v369
        %v371 = vrot.slane %v370, 1
        %v372 = vadd.f32 %v370, %v371
        %v373 = vsel %vm337, %v334, 0.0
        %v374 = vrot.slane %v373, 4
        %v375 = vadd.f32 %v373, %v374
        %v376 = vrot.slane %v375, 2
        %v377 = vadd.f32 %v375, %v376
        %v378 = vrot.slane %v377, 1
        %v379 = vadd.f32 %v377, %v378
        %v380 = vsel %vm337, %v335, 0.0
        %v381 = vrot.slane %v380, 4
        %v382 = vadd.f32 %v380, %v381
        %v383 = vrot.slane %v382, 2
        %v384 = vadd.f32 %v382, %v383
        %v385 = vrot.slane %v384, 1
        %v386 = vadd.f32 %v384, %v385
        %v387 = vsel %vm337, %v336, 0.0
        %v388 = vrot.slane %v387, 4
        %v389 = vadd.f32 %v387, %v388
        %v390 = vrot.slane %v389, 2
        %v391 = vadd.f32 %v389, %v390
        %v392 = vrot.slane %v391, 1
        %v393 = vadd.f32 %v391, %v392
        %v394 = vmul.f32 %v344, 0.125
        %v395 = vmul.f32 %v351, 0.125
        %v396 = vmul.f32 %v358, 0.125
        %v397 = vmul.f32 %v365, 0.125
        %v398 = vmul.f32 %v372, 0.125
        %v399 = vmul.f32 %v379, 0.125
        %v400 = vmul.f32 %v386, 0.125
        %v401 = vmul.f32 %v393, 0.125
        %v402 = vpack.c.bf16 %v394, %v394
        %v403 = vpack.c.bf16 %v395, %v395
        %v404 = vpack.c.bf16 %v396, %v396
        %v405 = vpack.c.bf16 %v397, %v397
        %v406 = vpack.c.bf16 %v398, %v398
        %v407 = vpack.c.bf16 %v399, %v399
        %v408 = vpack.c.bf16 %v400, %v400
        %v409 = vpack.c.bf16 %v401, %v401
        %v410 = vld [vmem:[#allocation6] sm:$0xf]
        %v411 = vld [vmem:[#allocation6 + $0x4] sm:$0xf]
        %v412 = vld [vmem:[#allocation6 + $0x8] sm:$0xf]
        %v413 = vld [vmem:[#allocation6 + $0xc] sm:$0xf]
        %v414 = vld [vmem:[%s2] sm:$0x1]
        %v416 = vlaneseq
        %v417 = vshrl.u32 %v416, 7
        %v418 = vsub.s32 0, %v417
        %v419 = vrot.slane %v414, %v418
        %v429 = vunpack.c.l.b16 %v402
        %v430 = vunpack.c.l.b16 %v403
        %v431 = vunpack.c.l.b16 %v404
        %v432 = vunpack.c.l.b16 %v405
        %v433 = vunpack.c.l.b16 %v406
        %v434 = vunpack.c.l.b16 %v407
        %v435 = vunpack.c.l.b16 %v408
        %v436 = vunpack.c.l.b16 %v409
        %vm437 = vcmask 1041409
        %v438 = vsel %vm437, %v430, %v429
        %vm439 = vcmask 1042434
        %v440 = vsel %vm439, %v431, %v438
        %vm441 = vcmask 1043459
        %v442 = vsel %vm441, %v432, %v440
        %vm443 = vcmask 1044484
        %v444 = vsel %vm443, %v433, %v442
        %vm445 = vcmask 1045509
        %v446 = vsel %vm445, %v434, %v444
        %vm447 = vcmask 1046534
        %v448 = vsel %vm447, %v435, %v446
        %vm449 = vcmask 1047559
        %v450 = vsel %vm449, %v436, %v448
        %v451 = vpack.c.b16 %v450, %v450
        %v456 = vunpack.c.l.b16 %v410
        %v457 = vunpack.c.l.b16 %v411
        %v458 = vunpack.c.l.b16 %v412
        %v459 = vunpack.c.l.b16 %v413
        %v460 = vpack.c.b16 %v457, %v456
        %v461 = vpack.c.b16 %v459, %v458
        %v465 = vsel %vm337, %v451, 0
        %467 = vmatprep.subr.bf16.mxu0 0
        %468 = vmatpush1.bf16.msra.mxu0 %v460
        %469 = vmatprep.subr.bf16.mxu0 0
        %470 = vmatpush1.bf16.msra.mxu0 %v461
        %471 = vmatprep.subr.bf16.mxu0 0
        %472 = vmatpush1.bf16.msra.mxu0 0
        %473 = vmatprep.subr.bf16.mxu0 0
        %474 = vmatpush1.bf16.msra.mxu0 0
        %475 = vmatprep.subr.bf16.mxu0 0
        %476 = vmatpush1.bf16.msra.mxu0 0
        %477 = vmatprep.subr.bf16.mxu0 0
        %478 = vmatpush1.bf16.msra.mxu0 0
        %479 = vmatprep.subr.bf16.mxu0 0
        %480 = vmatpush1.bf16.msra.mxu0 0
        %481 = vmatprep.subr.bf16.mxu0 0
        %482 = vmatpush1.bf16.msra.mxu0 0
        %483 = vmatprep.subr.bf16.mxu0 0
        %484 = vmatpush1.bf16.msra.mxu0 0
        %485 = vmatprep.subr.bf16.mxu0 0
        %486 = vmatpush1.bf16.msra.mxu0 0
        %487 = vmatprep.subr.bf16.mxu0 0
        %488 = vmatpush1.bf16.msra.mxu0 0
        %489 = vmatprep.subr.bf16.mxu0 0
        %490 = vmatpush1.bf16.msra.mxu0 0
        %491 = vmatprep.subr.bf16.mxu0 0
        %492 = vmatpush1.bf16.msra.mxu0 0
        %493 = vmatprep.subr.bf16.mxu0 0
        %494 = vmatpush1.bf16.msra.mxu0 0
        %495 = vmatprep.subr.bf16.mxu0 0
        %496 = vmatpush1.bf16.msra.mxu0 0
        %497 = vmatprep.subr.bf16.mxu0 0
        %498 = vmatpush1.bf16.msra.mxu0 0
        %499 = vmatprep.mubr.bf16.mxu0 0
        %500 = vmatmul.mubr.bf16.gmra.mrb[0].mxu0 %v465
        %v501 = vpop.f32.mrb[0].mxu0
        %v502 = vadd.f32 %v419, %v501
        %v503 = vpop.f32.mrb[0].mxu0
        %v504 = vpop.f32.mrb[0].mxu0
        %v505 = vpop.f32.mrb[0].mxu0
        %506 = vdwg.mxu0
        %vm507 = vcmp.gt.f32.partialorder %v502, 0.0
        %v508 = vmin.f32 %v502, 0.0
        %v509 = vmul.f32 %v508, 1.442695
        %v510 = vpow.pop %v509
        %v511 = vsub.f32 %v510, 1.0
        %v512 = vsel %vm507, %v502, %v511
        %v513 = vpack.c.bf16 %v512, %v512
        %v514 = vld [vmem:[#allocation8] sm:$0xf]
        %v515 = vld [vmem:[#allocation8 + $0x4] sm:$0xf]
        %v516 = vld [vmem:[#allocation8 + $0x8] sm:$0xf]
        %v517 = vld [vmem:[#allocation8 + $0xc] sm:$0xf]
        %v518 = vld [vmem:[#allocation8 + $0x10] sm:$0xf]
        %v519 = vld [vmem:[#allocation8 + $0x14] sm:$0xf]
        %v520 = vld [vmem:[#allocation8 + $0x18] sm:$0xf]
        %v521 = vld [vmem:[#allocation8 + $0x1c] sm:$0xf]
        %v522 = vld [vmem:[%s4] sm:$0x1]
        %v524 = vlaneseq
        %v525 = vshrl.u32 %v524, 7
        %v526 = vsub.s32 0, %v525
        %v527 = vrot.slane %v522, %v526
        %v537 = vunpack.c.l.b16 %v514
        %v538 = vunpack.c.l.b16 %v515
        %v539 = vunpack.c.l.b16 %v516
        %v540 = vunpack.c.l.b16 %v517
        %v541 = vunpack.c.l.b16 %v518
        %v542 = vunpack.c.l.b16 %v519
        %v543 = vunpack.c.l.b16 %v520
        %v544 = vunpack.c.l.b16 %v521
        %v545 = vpack.c.b16 %v538, %v537
        %v546 = vpack.c.b16 %v540, %v539
        %v547 = vpack.c.b16 %v542, %v541
        %v548 = vpack.c.b16 %v544, %v543
        %vm553 = vcmask 523264
        %v555 = vsel %vm553, %v513, 0
        %557 = vmatprep.subr.bf16.mxu0 0
        %558 = vmatpush1.bf16.msra.mxu0 %v545
        %559 = vmatprep.subr.bf16.mxu0 0
        %560 = vmatpush1.bf16.msra.mxu0 %v546
        %561 = vmatprep.subr.bf16.mxu0 0
        %562 = vmatpush1.bf16.msra.mxu0 %v547
        %563 = vmatprep.subr.bf16.mxu0 0
        %564 = vmatpush1.bf16.msra.mxu0 %v548
        %565 = vmatprep.subr.bf16.mxu0 0
        %566 = vmatpush1.bf16.msra.mxu0 0
        %567 = vmatprep.subr.bf16.mxu0 0
        %568 = vmatpush1.bf16.msra.mxu0 0
        %569 = vmatprep.subr.bf16.mxu0 0
        %570 = vmatpush1.bf16.msra.mxu0 0
        %571 = vmatprep.subr.bf16.mxu0 0
        %572 = vmatpush1.bf16.msra.mxu0 0
        %573 = vmatprep.subr.bf16.mxu0 0
        %574 = vmatpush1.bf16.msra.mxu0 0
        %575 = vmatprep.subr.bf16.mxu0 0
        %576 = vmatpush1.bf16.msra.mxu0 0
        %577 = vmatprep.subr.bf16.mxu0 0
        %578 = vmatpush1.bf16.msra.mxu0 0
        %579 = vmatprep.subr.bf16.mxu0 0
        %580 = vmatpush1.bf16.msra.mxu0 0
        %581 = vmatprep.subr.bf16.mxu0 0
        %582 = vmatpush1.bf16.msra.mxu0 0
        %583 = vmatprep.subr.bf16.mxu0 0
        %584 = vmatpush1.bf16.msra.mxu0 0
        %585 = vmatprep.subr.bf16.mxu0 0
        %586 = vmatpush1.bf16.msra.mxu0 0
        %587 = vmatprep.subr.bf16.mxu0 0
        %588 = vmatpush1.bf16.msra.mxu0 0
        %589 = vmatprep.mubr.bf16.mxu0 0
        %590 = vmatmul.mubr.bf16.gmra.mrb[0].mxu0 %v555
        %v591 = vpop.f32.mrb[0].mxu0
        %v592 = vadd.f32 %v527, %v591
        %v593 = vpop.f32.mrb[0].mxu0
        %v594 = vpop.f32.mrb[0].mxu0
        %v595 = vpop.f32.mrb[0].mxu0
        %596 = vdwg.mxu0
        %vm597 = vcmp.gt.f32.partialorder %v592, 0.0
        %v598 = vmin.f32 %v592, 0.0
        %v599 = vmul.f32 %v598, 1.442695
        %v600 = vpow.pop %v599
        %v601 = vsub.f32 %v600, 1.0
        %v602 = vsel %vm597, %v592, %v601
        %v603 = vld [vmem:[%s5] sm:$0x1]
        %v605 = vlaneseq
        %v606 = vshrl.u32 %v605, 7
        %v607 = vsub.s32 0, %v606
        %v608 = vrot.slane %v603, %v607
        %v610 = vmul.f32 %v602, %v608
        %v611 = vsel %vm553, %v610, 0.0
        %612 = vadd.xlane.f32.xlu0 %v611
        %v613 = vpop.xlane.xlu0 %612
        %s614 = sld [smem:[#allocation2]]
        %v615 = vstv %s614
        %v616 = vadd.f32 %v613, %v615
        %617 = vst [vmem:[%s326] sm:$0xff] %v616
        %s618 = sand.u32 %s186, 1
        %s619 = scalar_lea.sflag [#allocation5], %s618
        %s620 = sand.u32 %s186, 1
        %s621 = smul.addr %s620, 8
        %s622 = scalar_lea.vmem [#allocation9], %s621
        // Predicated region
        $region61: #{tpu_custom_call.1} parent=47 // pred_check
          %p623 = pneg %p196
        $region62: #{tpu_custom_call.1} parent=47 // pred_check_branch
          %625 = sbr.rel (%p623) target = $region64
        $region63: #{tpu_custom_call.1} parent=47 // pred_region
          %s627 = ssub.s32 128, 128
          %628 = vsyncadd %s619, %s627
          %s629 = smul.addr %s26, 128
          %s630 = scalar_lea.hbm %s7, %s629
          %s632 = sshll.u32 %s622, 4
          %s633 = int_to_ptr.vmem [resolvable:$true] %s632
          %635 = dma.vmem_to_hbm [thread:$0]  %s633, 128, %s630, %s619
        $region64: #{tpu_custom_call.1} parent=47 // pred_fallthru
          _
      $region48: #{tpu_custom_call.1} parent=5 // pred_fallthru
        _
      %p636 = scmp.le.s32.totalorder 2, %s21
      // Predicated region
      $region65: #{tpu_custom_call.1} parent=5 // pred_check
        %p637 = pneg %p636
      $region66: #{tpu_custom_call.1} parent=5 // pred_check_branch
        %639 = sbr.rel (%p637) target = $region68
      $region67: #{tpu_custom_call.1} parent=5 // pred_region
        %s640 = ssub.s32 %s21, 2
        // Predicated region
        $region69: #{tpu_custom_call.1} parent=67 // pred_check
          %p641 = pneg %p202
        $region70: #{tpu_custom_call.1} parent=67 // pred_check_branch
          %643 = sbr.rel (%p641) target = $region72
        $region71: #{tpu_custom_call.1} parent=67 // pred_region
          %s644 = sand.u32 %s187, 1
          %s645 = scalar_lea.sflag [#allocation5], %s644
          %s646 = sand.u32 %s187, 1
          %s647 = smul.addr %s646, 8
          %s648 = scalar_lea.vmem [#allocation9], %s647
          %649 = dma.done %s645, 128
        $region72: #{tpu_custom_call.1} parent=67 // pred_fallthru
          _
      $region68: #{tpu_custom_call.1} parent=5 // pred_fallthru
        _
    $region6: #{tpu_custom_call.1} parent=1 // loop_footer
      %s25 = sadd.s32 1, %s21
    $region7: #{tpu_custom_call.1} parent=1 // loop_footer_branch
      %20 = sbr.rel target = $region3
    $region8: #{tpu_custom_call.1} parent=1 // loop_exit
      _
    %650 = vsyncpa [#allocation4], 1
    %s651 = scalar_lea.sflag [#allocation4], 1
    %652 = vsyncpa %s651, 1
    %653 = vsyncpa [#allocation7], 1
    %654 = vsyncpa [#allocation5], 1
    %s655 = scalar_lea.sflag [#allocation5], 1
    %656 = vsyncpa %s655, 1

</llo_original>
